<compile_context>
chip_gen: v6e
topology: v6e:2x2x1
jax: 0.10.0
libtpu: 0.0.40
codegen_flags: <defaults>
</compile_context>

<pallas_src>
import functools

import jax
import jax.numpy as jnp
from jax.experimental import pallas as pl
from jax.experimental.pallas import tpu as pltpu


def _label_smoothing_partial_kernel(logits_ref, targets_ref, partial_ref, *,
                                    num_classes: int, smoothing: float,
                                    n_rows: int, block_rows: int,
                                    low_precision_exp: bool):
    """Writes this row-tile's summed (un-normalized) loss into partial_ref."""
    confidence = 1.0 - smoothing
    off_value = smoothing / (num_classes - 1)

    x = logits_ref[...]                                    # (TN, C) native dtype
    tgt = targets_ref[...]                                 # (TN, 1) int32

    # Row max is exact in the native dtype (compares only, no rounding).
    m_native = jnp.max(x, axis=-1, keepdims=True)          # (TN, 1)
    m = m_native.astype(jnp.float32)

    if low_precision_exp and x.dtype != jnp.float32:
        # bf16 subtract + exp (bf16 VALU/EUP chips), f32 accumulation of the sum.
        ez = jnp.exp(x - m_native)                          # (TN, C) native
        sum_ez = jnp.sum(ez, axis=-1, keepdims=True, dtype=jnp.float32)
    else:
        # Default: promote + subtract + exp, fused, all-f32 numerics.
        sum_ez = jnp.sum(jnp.exp(x.astype(jnp.float32) - m),
                         axis=-1, keepdims=True)
    lse = jnp.log(sum_ez)                                   # (TN, 1) f32

    # sum_z and z[target] from the native-dtype input (f32 accumulation):
    #   sum_z_i = sum_c x_ic - C * m_i ;  z_tgt_i = x_i[t_i] - m_i
    sum_x = jnp.sum(x, axis=-1, keepdims=True, dtype=jnp.float32)
    col = jax.lax.broadcasted_iota(jnp.int32, (1, num_classes), 1)   # (1, C)
    x_tgt = jnp.sum(jnp.where(col == tgt, x, 0), axis=-1,
                    keepdims=True, dtype=jnp.float32)
    sum_z = sum_x - num_classes * m
    z_tgt = x_tgt - m

    # Closed-form smoothed NLL (no (TN, C) true_dist materialization):
    #   loss_i = off*(C*lse_i - sum_z_i) + (conf - off)*(lse_i - z_tgt_i)
    per_row = (off_value * (num_classes * lse - sum_z)
               + (confidence - off_value) * (lse - z_tgt))   # (TN, 1)

    # Mask rows past the true N (last tile may be padded by cdiv). A select
    # (not a multiply), so NaN/Inf from garbage padded rows cannot propagate.
    row = (pl.program_id(0) * block_rows
           + jax.lax.broadcasted_iota(jnp.int32, per_row.shape, 0))
    per_row = jnp.where(row < n_rows, per_row, 0.0)

    # Broadcast the tile partial into a lane-dense (1, 8, 128) output block
    # (unmasked vst; wrapper reads [i, 0, 0]).
    tile_sum = jnp.sum(per_row)
    partial_ref[...] = jnp.full(partial_ref.shape, tile_sum, dtype=jnp.float32)


def _vmem_limit_bytes() -> int:
    """Scoped-VMEM request: generous on 128 MiB parts, conservative on v7x."""
    try:
        cap = int(pltpu.get_tpu_info().vmem_capacity_bytes)
    except Exception:          # info query unavailable -> assume smallest part
        cap = 64 * 1024 * 1024
    if cap >= 128 * 1024 * 1024:          # v5e / v6e
        return 96 * 1024 * 1024
    return 32 * 1024 * 1024               # v7x (64 MiB physical per TC)


def _pick_block_rows(n: int, c: int, dtype, vmem_limit: int) -> int:
    """Largest row tile whose in-flight VMEM fits the scoped limit."""
    itemsize = jnp.dtype(dtype).itemsize
    sublane = 8 * max(4 // itemsize, 1)     # 8 f32 / 16 bf16 / 32 int8 rows
    # Per-row in-flight bytes:
    #   2 * C * itemsize : double-buffered native-dtype logits slabs
    #   4 * C * 4        : ~4 full-width f32 kernel temporaries (promote/sub,
    #                      exp, compare/select, reduction staging)
    #   2 * 128 * 4      : targets block padded to 128 lanes, double-buffered
    per_row = 2 * c * itemsize + 4 * c * 4 + 2 * 128 * 4
    budget = int(vmem_limit * 0.75)         # headroom for output block + misc
    rows = max(budget // per_row, 1)
    rows = (rows // sublane) * sublane
    rows = max(rows, sublane)
    if rows >= n:
        return n                             # full-extent block is always legal
    return rows


def label_smoothing_loss(logits: jax.Array, targets: jax.Array,
                         num_classes: int, smoothing: float = 0.1,
                         block_rows: int | None = None,
                         low_precision_exp: bool = False) -> jax.Array:
    """logits: (N, C) float (any float dtype), targets: (N,) int. Returns f32 scalar."""
    n, c = logits.shape
    assert c == num_classes
    targets_2d = targets.astype(jnp.int32).reshape(n, 1)

    vmem_limit = _vmem_limit_bytes()
    if block_rows is None:
        block_rows = _pick_block_rows(n, c, logits.dtype, vmem_limit)
    block_rows = min(block_rows, n)
    if block_rows < n:
        # Keep (8, 128)-legal tiles for user-provided sizes.
        block_rows = min(max((block_rows // 8) * 8, 8), n)
    num_tiles = pl.cdiv(n, block_rows)

    # TODO(synk): for very large C (vocab where even a ~2 MiB row slab forces
    # tiny TN) add an inner "arbitrary" class-axis grid with an online
    # logsumexp + running sum_x / x[target] so temporaries are bounded
    # independent of C.

    kernel = functools.partial(_label_smoothing_partial_kernel,
                               num_classes=num_classes, smoothing=smoothing,
                               n_rows=n, block_rows=block_rows,
                               low_precision_exp=low_precision_exp)

    partials = pl.pallas_call(
        kernel,
        out_shape=jax.ShapeDtypeStruct((num_tiles, 8, 128), jnp.float32),
        grid=(num_tiles,),
        in_specs=[
            pl.BlockSpec((block_rows, c), lambda i: (i, 0)),   # logits row tile
            pl.BlockSpec((block_rows, 1), lambda i: (i, 0)),   # targets row tile
        ],
        out_specs=pl.BlockSpec((1, 8, 128), lambda i: (i, 0, 0)),
        compiler_params=pltpu.CompilerParams(
            dimension_semantics=("parallel",),
            vmem_limit_bytes=vmem_limit),
    )(logits, targets_2d)

    # Final reduction and mean over the *true* row count in the wrapper.
    return jnp.sum(partials[:, 0, 0]) / jnp.float32(n)


def _reference(logits, targets, num_classes, smoothing):
    confidence = 1.0 - smoothing
    logp = jax.nn.log_softmax(logits.astype(jnp.float32), axis=-1)
    true_dist = jnp.full_like(logp, smoothing / (num_classes - 1))
    true_dist = true_dist.at[jnp.arange(logits.shape[0]), targets].set(confidence)
    return jnp.mean(jnp.sum(-true_dist * logp, axis=-1))


if __name__ == "__main__":
    smoothing = 0.1
    key = jax.random.PRNGKey(0)
    k1, k2, k3, k4, k5, k6 = jax.random.split(key, 6)

    # Case 1: tiny single-tile case (matches the module docstring shapes).
    num_classes, batch = 32, 8
    logits = jax.random.normal(k1, (batch, num_classes), dtype=jnp.float32)
    targets = jax.random.randint(k2, (batch,), 0, num_classes, dtype=jnp.int32)
    loss = jax.block_until_ready(
        label_smoothing_loss(logits, targets, num_classes, smoothing))
    ref = _reference(logits, targets, num_classes, smoothing)
    assert jnp.allclose(loss, ref, atol=1e-5, rtol=1e-4), (loss, ref)

    # Case 2: multi-tile grid with a padded final tile (N not a multiple of TN),
    # exercising row tiling, per-tile partials, and in-kernel row masking.
    n2, c2 = 20, 128
    logits2 = jax.random.normal(k3, (n2, c2), dtype=jnp.float32)
    targets2 = jax.random.randint(k4, (n2,), 0, c2, dtype=jnp.int32)
    loss2 = jax.block_until_ready(
        label_smoothing_loss(logits2, targets2, c2, smoothing, block_rows=8))
    ref2 = _reference(logits2, targets2, c2, smoothing)
    assert jnp.allclose(loss2, ref2, atol=1e-5, rtol=1e-4), (loss2, ref2)

    # Case 3: bf16 logits with auto tile size (native-dtype sum_x / x[target]
    # path, f32 log-softmax numerics).
    n3, c3 = 64, 256
    logits3 = jax.random.normal(k5, (n3, c3), dtype=jnp.float32).astype(jnp.bfloat16)
    targets3 = jax.random.randint(k6, (n3,), 0, c3, dtype=jnp.int32)
    loss3 = jax.block_until_ready(
        label_smoothing_loss(logits3, targets3, c3, smoothing))
    ref3 = _reference(logits3, targets3, c3, smoothing)
    assert jnp.allclose(loss3, ref3, atol=1e-4, rtol=1e-3), (loss3, ref3)

    print("KERNEL_OK")
</pallas_src>

<mosaic_0001>
module attributes {stable_mosaic.version = 11 : i64} {
  func.func @_label_smoothing_partial_kernel(%arg0: i32, %arg1: memref<8x32xf32, #tpu.memory_space<vmem>>, %arg2: memref<8x1xi32, #tpu.memory_space<vmem>>, %arg3: memref<1x8x128xf32, #tpu.memory_space<vmem>>) attributes {dimension_semantics = [#tpu.dimension_semantics<parallel>], iteration_bounds = array<i64: 1>, scalar_prefetch = 0 : i64, scratch_operands = 0 : i64, tpu.core_type = #tpu.core_type<tc>, window_params = [{transform_indices = @transform_0, window_bounds = array<i64: 8, 32>}, {transform_indices = @transform_1, window_bounds = array<i64: 8, 1>}, {transform_indices = @transform_2, window_bounds = array<i64: 1, 8, 128>}]} {
    %c0 = arith.constant 0 : index
    %c0_0 = arith.constant 0 : index
    %0 = vector.load %arg1[%c0, %c0_0] : memref<8x32xf32, #tpu.memory_space<vmem>>, vector<8x32xf32>
    %c0_1 = arith.constant 0 : index
    %c0_2 = arith.constant 0 : index
    %1 = vector.load %arg2[%c0_1, %c0_2] : memref<8x1xi32, #tpu.memory_space<vmem>>, vector<8x1xi32>
    %cst = arith.constant dense<0xFF800000> : vector<8xf32>
    %2 = vector.multi_reduction <maximumf>, %0, %cst [1] : vector<8x32xf32> to vector<8xf32>
    %3 = vector.shape_cast %2 : vector<8xf32> to vector<8x1xf32>
    %4 = vector.broadcast %3 : vector<8x1xf32> to vector<8x32xf32>
    %5 = arith.subf %0, %4 : vector<8x32xf32>
    %6 = math.exp %5 : vector<8x32xf32>
    %cst_3 = arith.constant dense<0.000000e+00> : vector<8xf32>
    %7 = vector.multi_reduction <add>, %6, %cst_3 [1] : vector<8x32xf32> to vector<8xf32>
    %8 = vector.shape_cast %7 : vector<8xf32> to vector<8x1xf32>
    %9 = math.log %8 : vector<8x1xf32>
    %cst_4 = arith.constant dense<0.000000e+00> : vector<8xf32>
    %10 = vector.multi_reduction <add>, %0, %cst_4 [1] : vector<8x32xf32> to vector<8xf32>
    %11 = vector.shape_cast %10 : vector<8xf32> to vector<8x1xf32>
    %12 = tpu.iota {dimensions = array<i32: 1>} : vector<1x32xi32>
    %13 = vector.broadcast %12 : vector<1x32xi32> to vector<8x32xi32>
    %14 = vector.broadcast %1 : vector<8x1xi32> to vector<8x32xi32>
    %15 = arith.cmpi eq, %13, %14 : vector<8x32xi32>
    %c0_i32 = arith.constant 0 : i32
    %16 = arith.sitofp %c0_i32 : i32 to f32
    %17 = vector.broadcast %16 : f32 to vector<8x32xf32>
    %18 = arith.select %15, %0, %17 : vector<8x32xi1>, vector<8x32xf32>
    %cst_5 = arith.constant dense<0.000000e+00> : vector<8xf32>
    %19 = vector.multi_reduction <add>, %18, %cst_5 [1] : vector<8x32xf32> to vector<8xf32>
    %20 = vector.shape_cast %19 : vector<8xf32> to vector<8x1xf32>
    %cst_6 = arith.constant 3.200000e+01 : f32
    %21 = vector.broadcast %cst_6 : f32 to vector<8x1xf32>
    %22 = arith.mulf %21, %3 : vector<8x1xf32>
    %23 = arith.subf %11, %22 : vector<8x1xf32>
    %24 = arith.subf %20, %3 : vector<8x1xf32>
    %cst_7 = arith.constant 3.200000e+01 : f32
    %25 = vector.broadcast %cst_7 : f32 to vector<8x1xf32>
    %26 = arith.mulf %25, %9 : vector<8x1xf32>
    %27 = arith.subf %26, %23 : vector<8x1xf32>
    %cst_8 = arith.constant 0.0032258064 : f32
    %28 = vector.broadcast %cst_8 : f32 to vector<8x1xf32>
    %29 = arith.mulf %28, %27 : vector<8x1xf32>
    %30 = arith.subf %9, %24 : vector<8x1xf32>
    %cst_9 = arith.constant 0.896774172 : f32
    %31 = vector.broadcast %cst_9 : f32 to vector<8x1xf32>
    %32 = arith.mulf %31, %30 : vector<8x1xf32>
    %33 = arith.addf %29, %32 : vector<8x1xf32>
    %c8_i32 = arith.constant 8 : i32
    %34 = arith.muli %arg0, %c8_i32 : i32
    %35 = tpu.iota {dimensions = array<i32: 0>} : vector<8x1xi32>
    %36 = vector.broadcast %34 : i32 to vector<8x1xi32>
    %37 = arith.addi %36, %35 : vector<8x1xi32>
    %c8_i32_10 = arith.constant 8 : i32
    %38 = vector.broadcast %c8_i32_10 : i32 to vector<8x1xi32>
    %39 = arith.cmpi slt, %37, %38 : vector<8x1xi32>
    %cst_11 = arith.constant 0.000000e+00 : f32
    %40 = vector.broadcast %cst_11 : f32 to vector<8x1xf32>
    %41 = arith.select %39, %33, %40 : vector<8x1xi1>, vector<8x1xf32>
    %42 = vector.shape_cast %41 : vector<8x1xf32> to vector<1x8x1xf32>
    %cst_12 = arith.constant dense<0.000000e+00> : vector<1xf32>
    %43 = vector.multi_reduction <add>, %42, %cst_12 [1, 2] : vector<1x8x1xf32> to vector<1xf32>
    %44 = vector.shape_cast %43 : vector<1xf32> to vector<1x1x1xf32>
    %45 = vector.extract %44[0, 0, 0] : f32 from vector<1x1x1xf32>
    %46 = vector.broadcast %45 : f32 to vector<1x8x128xf32>
    %c0_13 = arith.constant 0 : index
    %c0_14 = arith.constant 0 : index
    %c0_15 = arith.constant 0 : index
    %47 = vector.load %arg3[%c0_13, %c0_14, %c0_15] : memref<1x8x128xf32, #tpu.memory_space<vmem>>, vector<1x8x128xf32>
    tpu.vector_store %arg3[%c0_13, %c0_14, %c0_15], %46 {strides = array<i32>} : memref<1x8x128xf32, #tpu.memory_space<vmem>>, vector<1x8x128xf32>,
    return
  }
  func.func @transform_0(%arg0: i32) -> (i32, i32) {
    %c0_i32 = arith.constant 0 : i32
    %c0_i32_0 = arith.constant 0 : i32
    return %arg0, %c0_i32 : i32, i32
  }
  func.func @transform_1(%arg0: i32) -> (i32, i32) {
    %c0_i32 = arith.constant 0 : i32
    %c0_i32_0 = arith.constant 0 : i32
    return %arg0, %c0_i32 : i32, i32
  }
  func.func @transform_2(%arg0: i32) -> (i32, i32, i32) {
    %c0_i32 = arith.constant 0 : i32
    %c0_i32_0 = arith.constant 0 : i32
    %c0_i32_1 = arith.constant 0 : i32
    return %arg0, %c0_i32, %c0_i32_0 : i32, i32, i32
  }
}

</mosaic_0001>

<llo_original>
// kernel: tpu_custom_call.1
$region0: #{tpu_custom_call.1}
  #allocation0 [shape = 'u32[]', space=smem, size = 0x4, offset = 0x4, fixed_abs, tag = 'smem constant byte address 0x4 - core index']
  #allocation1 [shape = 'u32[144,128]{1,0:T(1,128)}', space=vmem, size = 0x12000, scoped, tag = 'internal scratch']
  %s0 = inlined_call_operand.vmem [shape: f32[8,32], index: 0, kind: input, shape index: {}]
  %s1 = inlined_call_operand.vmem [shape: s32[8,1], index: 1, kind: input, shape index: {}]
  %s2 = inlined_call_operand.hbm [shape: f32[1,8,128], index: 2, kind: output, shape index: {}]
  %s3 = sld [smem:[#allocation0]]
  $region18: #{tpu_custom_call.1} parent=0
    _
  %s5 = ssub.s32 1, %s3
  %s6 = scalar_select 0, %s5, %s3
  $region1: #{tpu_custom_call.1} parent=0
    #allocation2 [shape = 'u8[4096]{0}', space=vmem, size = 0x1000, scoped, tag = 'output window, operand 0, single buffered']
    #allocation3 [shape = 's32[1]{0}', space=sflag, size = 0x4, scoped, tag = 'scoped memory for tpu_custom_call.1']
    %7 = vsyncpa [#allocation3], 0
    // Predicated region
    $region2: #{tpu_custom_call.1} parent=1 // pred_check
      _
    $region3: #{tpu_custom_call.1} parent=1 // pred_check_branch
      %9 = sbr.rel (0) target = $region5
    $region4: #{tpu_custom_call.1} parent=1 // pred_region
      _
    $region5: #{tpu_custom_call.1} parent=1 // pred_fallthru
      _
    // Predicated region
    $region6: #{tpu_custom_call.1} parent=1 // pred_check
      _
    $region7: #{tpu_custom_call.1} parent=1 // pred_check_branch
      %11 = sbr.rel (0) target = $region9
    $region8: #{tpu_custom_call.1} parent=1 // pred_region
      _
    $region9: #{tpu_custom_call.1} parent=1 // pred_fallthru
      _
    %v12 = vld [vmem:[%s0] sm:$0xff]
    %v13 = vld [vmem:[%s1] sm:$0xff]
    %vm14 = vcmask 261120
    %v15 = vsel %vm14, %v12, -inf
    %16 = vmax.xlane.f32.xlu0 %v15
    %v17 = vpop.xlane.xlu0 %16
    %v18 = vsub.f32 %v12, %v17
    %v19 = vmul.f32 %v18, 1.442695
    %v20 = vpow.pop %v19
    %v21 = vsel %vm14, %v20, 0.0
    %22 = vadd.xlane.f32.xlu0 %v21
    %v23 = vpop.xlane.xlu0 %22
    %v24 = vlog2.pop %v23
    %v25 = vmul.f32 %v24, 0.6931472
    %v26 = vsel %vm14, %v12, 0.0
    %27 = vadd.xlane.f32.xlu0 %v26
    %v28 = vpop.xlane.xlu0 %27
    %v29 = vlaneseq
    %v30 = vand.u32 %v29, 127
    %31 = vset.pattern.permute.xlu0 0
    %32 = vperm.xlu0 %31, %v13
    %v33 = vpop.permute.xlu0 %32
    %vm34 = vcmp.eq.s32.totalorder %v30, %v33
    %v35 = vsel %vm34, %v12, 0.0
    %v36 = vsel %vm14, %v35, 0.0
    %37 = vadd.xlane.f32.xlu0 %v36
    %v38 = vpop.xlane.xlu0 %37
    %v39 = vmul.f32 %v17, 32.0
    %v40 = vsub.f32 %v28, %v39
    %v41 = vsub.f32 %v38, %v17
    %v42 = vmul.f32 %v25, 32.0
    %v43 = vsub.f32 %v42, %v40
    %v44 = vmul.f32 %v43, 0.0032258064
    %v45 = vsub.f32 %v25, %v41
    %v46 = vmul.f32 %v45, 0.8967742
    %v47 = vadd.f32 %v44, %v46
    %s48 = smul.u32 0, 8
    %v49 = vlaneseq
    %v50 = vshrl.u32 %v49, 7
    %v51 = vstv %s48
    %v52 = vadd.s32 %v51, %v50
    %vm53 = vcmp.lt.s32.totalorder %v52, 8
    %v54 = vsel %vm53, %v47, 0.0
    %vm55 = vcmask 7168
    %v56 = vsel %vm55, %v54, 0.0
    %57 = vadd.xlane.f32.xlu0 %v56
    %v58 = vpop.xlane.xlu0 %57
    %v59 = vrot.slane %v58, 4
    %v60 = vadd.f32 %v58, %v59
    %v61 = vrot.slane %v60, 2
    %v62 = vadd.f32 %v60, %v61
    %v63 = vrot.slane %v62, 1
    %v64 = vadd.f32 %v62, %v63
    %s65 = vtos %v64
    %v66 = vstv %s65
    %67 = vst [vmem:[#allocation2] sm:$0xff] %v66
    // Predicated region
    $region10: #{tpu_custom_call.1} parent=1 // pred_check
      _
    $region11: #{tpu_custom_call.1} parent=1 // pred_check_branch
      %69 = sbr.rel (0) target = $region13
    $region12: #{tpu_custom_call.1} parent=1 // pred_region
      %s71 = ssub.s32 128, 128
      %72 = vsyncadd [#allocation3], %s71
      %s74 = sshll.u32 [#allocation2], 4
      %s75 = int_to_ptr.vmem [resolvable:$true] %s74
      %77 = dma.vmem_to_hbm [thread:$0]  %s75, 128, %s2, [#allocation3]
    $region13: #{tpu_custom_call.1} parent=1 // pred_fallthru
      _
    // Predicated region
    $region14: #{tpu_custom_call.1} parent=1 // pred_check
      _
    $region15: #{tpu_custom_call.1} parent=1 // pred_check_branch
      %79 = sbr.rel (0) target = $region17
    $region16: #{tpu_custom_call.1} parent=1 // pred_region
      %80 = dma.done [#allocation3], 128
    $region17: #{tpu_custom_call.1} parent=1 // pred_fallthru
      _
    %81 = vsyncpa [#allocation3], 1

</llo_original>
